<compile_context>
chip_gen: v7x
topology: tpu7x:2x2x1
jax: 0.10.0
libtpu: 0.0.40
codegen_flags: <defaults>
</compile_context>

<pallas_src>
import jax
import jax.numpy as jnp
from jax.experimental import pallas as pl
from jax.experimental.pallas import tpu as pltpu


def value_head_kernel(x_ref, w1_ref, b1_ref, w2_ref, b2_ref, o_ref):
    # x_ref:  (tm, H)   input tile (caller dtype; cast to bf16 here)
    # w1_ref: (H, tn)   bf16 fc1 weight column chunk (in x out layout)
    # b1_ref: (1, tn)   f32 fc1 bias chunk
    # w2_ref: (1, tn)   f32 fc2 weight chunk
    # b2_ref: (1,)      f32 fc2 bias scalar (SMEM)
    # o_ref:  (tm, 1)   f32 per-row value; accumulator across the column axis
    j = pl.program_id(1)

    @pl.when(j == 0)
    def _init():
        o_ref[...] = jnp.zeros_like(o_ref)

    # fc1 chunk on the MXU (bf16 inputs, f32 accumulation), bias + ReLU on VPU.
    x = x_ref[...].astype(jnp.bfloat16)
    h = jnp.dot(x, w1_ref[...], preferred_element_type=jnp.float32)
    h = jnp.maximum(h + b1_ref[...], 0.0)
    # fc2 has output width 1 -> VPU multiply + lane reduction (XLU), fused.
    o_ref[...] += jnp.sum(h * w2_ref[...], axis=-1, keepdims=True)

    @pl.when(j == pl.num_programs(1) - 1)
    def _finalize():
        o_ref[...] += b2_ref[0]


def _pick_tn(hidden):
    """fc1 output-column tile. Full width (resident W1) for small/medium H."""
    if hidden <= 2048 or hidden % 128 != 0:
        return hidden
    # Target ~8 MiB per bf16 W1 column block, multiple of 128 dividing hidden.
    tn = max(128, min(2048, (8 * 1024 * 1024) // (2 * hidden)))
    tn = (tn // 128) * 128
    while hidden % tn != 0:
        tn -= 128
    return tn


def _pick_tm(hidden, n):
    """Row tile: ~2-4 MiB of x per buffer, multiple of 16 (bf16 sublanes)."""
    if hidden <= 1024:
        tm = 1024
    elif hidden <= 2048:
        tm = 512
    else:
        tm = 256
    tm = max(16, min(tm, ((n + 15) // 16) * 16))
    return ((tm + 15) // 16) * 16


def _usable_vmem_bytes():
    """Generation-aware VMEM ceiling (capacity minus headroom)."""
    try:
        cap = int(pltpu.get_tpu_info().vmem_capacity_bytes)
    except Exception:
        cap = 64 * 1024 * 1024  # conservative (v7x-sized) fallback
    return max(cap - 16 * 1024 * 1024, 32 * 1024 * 1024)


def value_head(features, w1, b1, w2, b2, *, tm=None, tn=None):
    """features: [..., hidden]. Returns array with shape features.shape[:-1].

    w1: [hidden, hidden] fc1 weight, pre-transposed (in x out). Pass it in
        bf16 (cast once at param-load time) to avoid a per-call HBM cast pass.
    b1: [hidden] fc1 bias.
    w2: fc2 weight with `hidden` elements ([hidden], [hidden,1] or [1,hidden]).
    b2: fc2 bias, 1 element.
    """
    orig_shape = features.shape
    hidden = orig_shape[-1]
    x = features.reshape(-1, hidden)
    n = x.shape[0]

    if w1.dtype != jnp.bfloat16:
        # Fallback only; callers should store W1 in bf16 so this never runs.
        w1 = w1.astype(jnp.bfloat16)
    b1_2d = jnp.asarray(b1, jnp.float32).reshape(1, hidden)
    w2_row = jnp.asarray(w2, jnp.float32).reshape(1, hidden)
    b2_1d = jnp.asarray(b2, jnp.float32).reshape(1)

    if tm is None:
        tm = _pick_tm(hidden, n)
    if tn is None:
        tn = _pick_tn(hidden)
    n_rows = pl.cdiv(n, tm)          # partial last row block handled by Mosaic
    n_cols = hidden // tn            # tn divides hidden by construction
    single_buffer_ok = (n_cols == 1)  # constant-index W1/b1/w2 -> Buffered(1)

    x_bytes = jnp.dtype(x.dtype).itemsize

    # Advisory cost estimate (fc1 dominates).
    flops = 2 * n * hidden * hidden + 3 * n * hidden
    bytes_accessed = (
        n * hidden * x_bytes                                   # x
        + hidden * hidden * 2 * (n_rows if n_cols > 1 else 1)  # W1 (bf16)
        + 2 * hidden * 4 + 4                                   # b1, w2, b2
        + n * 4)                                               # output

    # VMEM budget: x (double buffered), W1 chunk (1 or 2 buffers), h
    # intermediate + in-kernel bf16 copy of x, biases, output accumulator.
    w1_bufs = 1 if single_buffer_ok else 2
    vmem_need = (2 * tm * hidden * x_bytes
                 + w1_bufs * hidden * tn * 2
                 + 2 * 2 * 8 * tn * 4
                 + tm * tn * 4 + tm * hidden * 2
                 + 2 * tm * 4)
    vmem_limit = int(min(max(int(vmem_need * 1.5), 32 * 1024 * 1024),
                         _usable_vmem_bytes()))

    def _call(single_buffer):
        def w_spec(shape, index_map):
            if single_buffer:
                return pl.BlockSpec(shape, index_map,
                                    pipeline_mode=pl.Buffered(1))
            return pl.BlockSpec(shape, index_map)

        return pl.pallas_call(
            value_head_kernel,
            out_shape=jax.ShapeDtypeStruct((n, 1), jnp.float32),
            grid=(n_rows, n_cols),
            in_specs=[
                pl.BlockSpec((tm, hidden), lambda i, j: (i, 0)),   # x tile
                w_spec((hidden, tn), lambda i, j: (0, j)),          # W1 chunk
                w_spec((1, tn), lambda i, j: (0, j)),               # b1 chunk
                w_spec((1, tn), lambda i, j: (0, j)),               # w2 chunk
                pl.BlockSpec(memory_space=pltpu.MemorySpace.SMEM),  # b2 scalar
            ],
            out_specs=pl.BlockSpec((tm, 1), lambda i, j: (i, 0)),
            compiler_params=pltpu.CompilerParams(
                dimension_semantics=("parallel", "arbitrary"),
                vmem_limit_bytes=vmem_limit,
            ),
            cost_estimate=pl.CostEstimate(
                flops=flops, transcendentals=0, bytes_accessed=bytes_accessed),
        )(x, w1, b1_2d, w2_row, b2_1d)

    if single_buffer_ok:
        try:
            out = _call(True)
        except Exception:
            # Fallback if pipeline_mode=pl.Buffered(1) is unsupported here.
            out = _call(False)
    else:
        out = _call(False)

    return out[:, 0].reshape(orig_shape[:-1])   # squeeze(-1)


def init_value_head_params(key, hidden_dim):
    """Deterministic params mimicking nn.Linear default init (uniform +-1/sqrt(fan_in))."""
    k1, k2, k3, k4 = jax.random.split(key, 4)
    bound1 = 1.0 / jnp.sqrt(hidden_dim)
    # fc1: weight [hidden, hidden], bias [hidden]; stored transposed (in x out).
    w1 = jax.random.uniform(k1, (hidden_dim, hidden_dim), jnp.float32, -bound1, bound1)
    b1 = jax.random.uniform(k2, (hidden_dim,), jnp.float32, -bound1, bound1)
    # fc2: weight [1, hidden], bias [1]; stored transposed -> [hidden, 1].
    w2 = jax.random.uniform(k3, (hidden_dim, 1), jnp.float32, -bound1, bound1)
    b2 = jax.random.uniform(k4, (1,), jnp.float32, -bound1, bound1)
    return w1, b1, w2, b2


if __name__ == "__main__":
    batch, seq, hidden = 2, 8, 32
    key = jax.random.PRNGKey(0)
    k_feat, k_params = jax.random.split(key)

    features = jax.random.normal(k_feat, (batch, seq, hidden), jnp.float32)
    w1, b1, w2, b2 = init_value_head_params(k_params, hidden)
    # Hoist the fc1 weight cast out of the per-call path (param-load-time cast).
    w1_bf16 = jnp.asarray(w1, jnp.bfloat16)

    values = value_head(features, w1_bf16, b1, w2, b2)
    values = jax.block_until_ready(values)

    # Reference with the same bf16 fc1 operands / f32 accumulation as the kernel.
    x2d = features.reshape(-1, hidden)
    h_ref = jnp.maximum(
        jnp.dot(x2d.astype(jnp.bfloat16), w1_bf16,
                preferred_element_type=jnp.float32) + b1, 0.0)
    ref = (h_ref @ w2.reshape(hidden, 1) + b2)[:, 0].reshape(batch, seq)

    # Full-f32 reference (exact PyTorch module semantics), bf16-sized tolerance.
    ref_f32 = (jnp.maximum(x2d @ w1 + b1, 0.0) @ w2.reshape(hidden, 1) + b2)[:, 0]
    ref_f32 = ref_f32.reshape(batch, seq)

    assert values.shape == (batch, seq), values.shape
    assert jnp.allclose(values, ref, atol=1e-4, rtol=1e-4), (
        float(jnp.max(jnp.abs(values - ref))))
    assert jnp.allclose(values, ref_f32, atol=5e-2, rtol=5e-2), (
        float(jnp.max(jnp.abs(values - ref_f32))))

    print("KERNEL_OK")
</pallas_src>

<mosaic_0001>
module attributes {stable_mosaic.version = 11 : i64} {
  func.func @value_head_kernel(%arg0: i32, %arg1: i32, %arg2: memref<16x32xf32, #tpu.memory_space<vmem>>, %arg3: memref<32x32xbf16, #tpu.memory_space<vmem>>, %arg4: memref<1x32xf32, #tpu.memory_space<vmem>>, %arg5: memref<1x32xf32, #tpu.memory_space<vmem>>, %arg6: memref<1xf32, #tpu.memory_space<smem>>, %arg7: memref<16x1xf32, #tpu.memory_space<vmem>>) attributes {dimension_semantics = [#tpu.dimension_semantics<parallel>, #tpu.dimension_semantics<arbitrary>], iteration_bounds = array<i64: 1, 1>, scalar_prefetch = 0 : i64, scratch_operands = 0 : i64, tpu.core_type = #tpu.core_type<tc>, window_params = [{transform_indices = @transform_0, window_bounds = array<i64: 16, 32>}, {pipeline_mode = #tpu.pipeline_mode<synchronous>, transform_indices = @transform_1, window_bounds = array<i64: 32, 32>}, {pipeline_mode = #tpu.pipeline_mode<synchronous>, transform_indices = @transform_2, window_bounds = array<i64: 1, 32>}, {pipeline_mode = #tpu.pipeline_mode<synchronous>, transform_indices = @transform_3, window_bounds = array<i64: 1, 32>}, {transform_indices = @transform_4, window_bounds = array<i64: 1>}, {transform_indices = @transform_5, window_bounds = array<i64: 16, 1>}]} {
    %c0_i32 = arith.constant 0 : i32
    %0 = arith.cmpi eq, %arg1, %c0_i32 : i32
    %1 = arith.extui %0 : i1 to i32
    %c0_i32_0 = arith.constant 0 : i32
    %2 = arith.cmpi ne, %1, %c0_i32_0 : i32
    scf.if %2 {
      %cst_16 = arith.constant 0.000000e+00 : f32
      %23 = vector.broadcast %cst_16 : f32 to vector<16x1xf32>
      %c0_17 = arith.constant 0 : index
      %c0_18 = arith.constant 0 : index
      %24 = vector.load %arg7[%c0_17, %c0_18] : memref<16x1xf32, #tpu.memory_space<vmem>>, vector<16x1xf32>
      tpu.vector_store %arg7[%c0_17, %c0_18], %23 {strides = array<i32>} : memref<16x1xf32, #tpu.memory_space<vmem>>, vector<16x1xf32>,
    } else {
    }
    %c0 = arith.constant 0 : index
    %c0_1 = arith.constant 0 : index
    %3 = vector.load %arg2[%c0, %c0_1] : memref<16x32xf32, #tpu.memory_space<vmem>>, vector<16x32xf32>
    %4 = arith.truncf %3 : vector<16x32xf32> to vector<16x32xbf16>
    %c0_2 = arith.constant 0 : index
    %c0_3 = arith.constant 0 : index
    %5 = vector.load %arg3[%c0_2, %c0_3] : memref<32x32xbf16, #tpu.memory_space<vmem>>, vector<32x32xbf16>
    %cst = arith.constant dense<0.000000e+00> : vector<16x32xf32>
    %6 = tpu.matmul %4, %5, %cst {dimension_numbers = #tpu.dot_dimension_numbers<[1], [0], [0], [1], [0, 0, 1, 1], [], []>} : vector<16x32xbf16>, vector<32x32xbf16>, vector<16x32xf32> -> vector<16x32xf32>
    %c0_4 = arith.constant 0 : index
    %c0_5 = arith.constant 0 : index
    %7 = vector.load %arg4[%c0_4, %c0_5] : memref<1x32xf32, #tpu.memory_space<vmem>>, vector<1x32xf32>
    %8 = vector.broadcast %7 : vector<1x32xf32> to vector<16x32xf32>
    %9 = arith.addf %6, %8 : vector<16x32xf32>
    %cst_6 = arith.constant 0.000000e+00 : f32
    %10 = vector.broadcast %cst_6 : f32 to vector<16x32xf32>
    %11 = arith.maximumf %9, %10 : vector<16x32xf32>
    %c0_7 = arith.constant 0 : index
    %c0_8 = arith.constant 0 : index
    %12 = vector.load %arg7[%c0_7, %c0_8] : memref<16x1xf32, #tpu.memory_space<vmem>>, vector<16x1xf32>
    %c0_9 = arith.constant 0 : index
    %c0_10 = arith.constant 0 : index
    %13 = vector.load %arg5[%c0_9, %c0_10] : memref<1x32xf32, #tpu.memory_space<vmem>>, vector<1x32xf32>
    %14 = vector.broadcast %13 : vector<1x32xf32> to vector<16x32xf32>
    %15 = arith.mulf %11, %14 : vector<16x32xf32>
    %cst_11 = arith.constant dense<0.000000e+00> : vector<16xf32>
    %16 = vector.multi_reduction <add>, %15, %cst_11 [1] : vector<16x32xf32> to vector<16xf32>
    %17 = vector.shape_cast %16 : vector<16xf32> to vector<16x1xf32>
    %18 = arith.addf %12, %17 : vector<16x1xf32>
    %c0_12 = arith.constant 0 : index
    %c0_13 = arith.constant 0 : index
    %19 = vector.load %arg7[%c0_12, %c0_13] : memref<16x1xf32, #tpu.memory_space<vmem>>, vector<16x1xf32>
    tpu.vector_store %arg7[%c0_12, %c0_13], %18 {strides = array<i32>} : memref<16x1xf32, #tpu.memory_space<vmem>>, vector<16x1xf32>,
    %c0_i32_14 = arith.constant 0 : i32
    %20 = arith.cmpi eq, %arg1, %c0_i32_14 : i32
    %21 = arith.extui %20 : i1 to i32
    %c0_i32_15 = arith.constant 0 : i32
    %22 = arith.cmpi ne, %21, %c0_i32_15 : i32
    scf.if %22 {
      %c0_16 = arith.constant 0 : index
      %c0_17 = arith.constant 0 : index
      %23 = vector.load %arg7[%c0_16, %c0_17] : memref<16x1xf32, #tpu.memory_space<vmem>>, vector<16x1xf32>
      %c0_18 = arith.constant 0 : index
      %24 = memref.load %arg6[%c0_18] : memref<1xf32, #tpu.memory_space<smem>>
      %25 = vector.broadcast %24 : f32 to vector<16x1xf32>
      %26 = arith.addf %23, %25 : vector<16x1xf32>
      %c0_19 = arith.constant 0 : index
      %c0_20 = arith.constant 0 : index
      %27 = vector.load %arg7[%c0_19, %c0_20] : memref<16x1xf32, #tpu.memory_space<vmem>>, vector<16x1xf32>
      tpu.vector_store %arg7[%c0_19, %c0_20], %26 {strides = array<i32>} : memref<16x1xf32, #tpu.memory_space<vmem>>, vector<16x1xf32>,
    } else {
    }
    return
  }
  func.func @transform_0(%arg0: i32, %arg1: i32) -> (i32, i32) {
    %c0_i32 = arith.constant 0 : i32
    %c0_i32_0 = arith.constant 0 : i32
    return %arg0, %c0_i32 : i32, i32
  }
  func.func @transform_1(%arg0: i32, %arg1: i32) -> (i32, i32) {
    %c0_i32 = arith.constant 0 : i32
    %c0_i32_0 = arith.constant 0 : i32
    return %c0_i32, %arg1 : i32, i32
  }
  func.func @transform_2(%arg0: i32, %arg1: i32) -> (i32, i32) {
    %c0_i32 = arith.constant 0 : i32
    %c0_i32_0 = arith.constant 0 : i32
    return %c0_i32, %arg1 : i32, i32
  }
  func.func @transform_3(%arg0: i32, %arg1: i32) -> (i32, i32) {
    %c0_i32 = arith.constant 0 : i32
    %c0_i32_0 = arith.constant 0 : i32
    return %c0_i32, %arg1 : i32, i32
  }
  func.func @transform_4(%arg0: i32, %arg1: i32) -> i32 {
    %c0_i32 = arith.constant 0 : i32
    %c0_i32_0 = arith.constant 0 : i32
    return %c0_i32 : i32
  }
  func.func @transform_5(%arg0: i32, %arg1: i32) -> (i32, i32) {
    %c0_i32 = arith.constant 0 : i32
    %c0_i32_0 = arith.constant 0 : i32
    return %arg0, %c0_i32 : i32, i32
  }
}

module attributes {stable_mosaic.version = 11 : i64} {
  func.func @value_head_kernel(%arg0: i32, %arg1: i32, %arg2: memref<16x32xf32, #tpu.memory_space<vmem>>, %arg3: memref<32x32xbf16, #tpu.memory_space<vmem>>, %arg4: memref<1x32xf32, #tpu.memory_space<vmem>>, %arg5: memref<1x32xf32, #tpu.memory_space<vmem>>, %arg6: memref<1xf32, #tpu.memory_space<smem>>, %arg7: memref<16x1xf32, #tpu.memory_space<vmem>>) attributes {dimension_semantics = [#tpu.dimension_semantics<parallel>, #tpu.dimension_semantics<arbitrary>], iteration_bounds = array<i64: 1, 1>, scalar_prefetch = 0 : i64, scratch_operands = 0 : i64, tpu.core_type = #tpu.core_type<tc>, window_params = [{transform_indices = @transform_0, window_bounds = array<i64: 16, 32>}, {transform_indices = @transform_1, window_bounds = array<i64: 32, 32>}, {transform_indices = @transform_2, window_bounds = array<i64: 1, 32>}, {transform_indices = @transform_3, window_bounds = array<i64: 1, 32>}, {transform_indices = @transform_4, window_bounds = array<i64: 1>}, {transform_indices = @transform_5, window_bounds = array<i64: 16, 1>}]} {
    %c0_i32 = arith.constant 0 : i32
    %0 = arith.cmpi eq, %arg1, %c0_i32 : i32
    %1 = arith.extui %0 : i1 to i32
    %c0_i32_0 = arith.constant 0 : i32
    %2 = arith.cmpi ne, %1, %c0_i32_0 : i32
    scf.if %2 {
      %cst_16 = arith.constant 0.000000e+00 : f32
      %23 = vector.broadcast %cst_16 : f32 to vector<16x1xf32>
      %c0_17 = arith.constant 0 : index
      %c0_18 = arith.constant 0 : index
      %24 = vector.load %arg7[%c0_17, %c0_18] : memref<16x1xf32, #tpu.memory_space<vmem>>, vector<16x1xf32>
      tpu.vector_store %arg7[%c0_17, %c0_18], %23 {strides = array<i32>} : memref<16x1xf32, #tpu.memory_space<vmem>>, vector<16x1xf32>,
    } else {
    }
    %c0 = arith.constant 0 : index
    %c0_1 = arith.constant 0 : index
    %3 = vector.load %arg2[%c0, %c0_1] : memref<16x32xf32, #tpu.memory_space<vmem>>, vector<16x32xf32>
    %4 = arith.truncf %3 : vector<16x32xf32> to vector<16x32xbf16>
    %c0_2 = arith.constant 0 : index
    %c0_3 = arith.constant 0 : index
    %5 = vector.load %arg3[%c0_2, %c0_3] : memref<32x32xbf16, #tpu.memory_space<vmem>>, vector<32x32xbf16>
    %cst = arith.constant dense<0.000000e+00> : vector<16x32xf32>
    %6 = tpu.matmul %4, %5, %cst {dimension_numbers = #tpu.dot_dimension_numbers<[1], [0], [0], [1], [0, 0, 1, 1], [], []>} : vector<16x32xbf16>, vector<32x32xbf16>, vector<16x32xf32> -> vector<16x32xf32>
    %c0_4 = arith.constant 0 : index
    %c0_5 = arith.constant 0 : index
    %7 = vector.load %arg4[%c0_4, %c0_5] : memref<1x32xf32, #tpu.memory_space<vmem>>, vector<1x32xf32>
    %8 = vector.broadcast %7 : vector<1x32xf32> to vector<16x32xf32>
    %9 = arith.addf %6, %8 : vector<16x32xf32>
    %cst_6 = arith.constant 0.000000e+00 : f32
    %10 = vector.broadcast %cst_6 : f32 to vector<16x32xf32>
    %11 = arith.maximumf %9, %10 : vector<16x32xf32>
    %c0_7 = arith.constant 0 : index
    %c0_8 = arith.constant 0 : index
    %12 = vector.load %arg7[%c0_7, %c0_8] : memref<16x1xf32, #tpu.memory_space<vmem>>, vector<16x1xf32>
    %c0_9 = arith.constant 0 : index
    %c0_10 = arith.constant 0 : index
    %13 = vector.load %arg5[%c0_9, %c0_10] : memref<1x32xf32, #tpu.memory_space<vmem>>, vector<1x32xf32>
    %14 = vector.broadcast %13 : vector<1x32xf32> to vector<16x32xf32>
    %15 = arith.mulf %11, %14 : vector<16x32xf32>
    %cst_11 = arith.constant dense<0.000000e+00> : vector<16xf32>
    %16 = vector.multi_reduction <add>, %15, %cst_11 [1] : vector<16x32xf32> to vector<16xf32>
    %17 = vector.shape_cast %16 : vector<16xf32> to vector<16x1xf32>
    %18 = arith.addf %12, %17 : vector<16x1xf32>
    %c0_12 = arith.constant 0 : index
    %c0_13 = arith.constant 0 : index
    %19 = vector.load %arg7[%c0_12, %c0_13] : memref<16x1xf32, #tpu.memory_space<vmem>>, vector<16x1xf32>
    tpu.vector_store %arg7[%c0_12, %c0_13], %18 {strides = array<i32>} : memref<16x1xf32, #tpu.memory_space<vmem>>, vector<16x1xf32>,
    %c0_i32_14 = arith.constant 0 : i32
    %20 = arith.cmpi eq, %arg1, %c0_i32_14 : i32
    %21 = arith.extui %20 : i1 to i32
    %c0_i32_15 = arith.constant 0 : i32
    %22 = arith.cmpi ne, %21, %c0_i32_15 : i32
    scf.if %22 {
      %c0_16 = arith.constant 0 : index
      %c0_17 = arith.constant 0 : index
      %23 = vector.load %arg7[%c0_16, %c0_17] : memref<16x1xf32, #tpu.memory_space<vmem>>, vector<16x1xf32>
      %c0_18 = arith.constant 0 : index
      %24 = memref.load %arg6[%c0_18] : memref<1xf32, #tpu.memory_space<smem>>
      %25 = vector.broadcast %24 : f32 to vector<16x1xf32>
      %26 = arith.addf %23, %25 : vector<16x1xf32>
      %c0_19 = arith.constant 0 : index
      %c0_20 = arith.constant 0 : index
      %27 = vector.load %arg7[%c0_19, %c0_20] : memref<16x1xf32, #tpu.memory_space<vmem>>, vector<16x1xf32>
      tpu.vector_store %arg7[%c0_19, %c0_20], %26 {strides = array<i32>} : memref<16x1xf32, #tpu.memory_space<vmem>>, vector<16x1xf32>,
    } else {
    }
    return
  }
  func.func @transform_0(%arg0: i32, %arg1: i32) -> (i32, i32) {
    %c0_i32 = arith.constant 0 : i32
    %c0_i32_0 = arith.constant 0 : i32
    return %arg0, %c0_i32 : i32, i32
  }
  func.func @transform_1(%arg0: i32, %arg1: i32) -> (i32, i32) {
    %c0_i32 = arith.constant 0 : i32
    %c0_i32_0 = arith.constant 0 : i32
    return %c0_i32, %arg1 : i32, i32
  }
  func.func @transform_2(%arg0: i32, %arg1: i32) -> (i32, i32) {
    %c0_i32 = arith.constant 0 : i32
    %c0_i32_0 = arith.constant 0 : i32
    return %c0_i32, %arg1 : i32, i32
  }
  func.func @transform_3(%arg0: i32, %arg1: i32) -> (i32, i32) {
    %c0_i32 = arith.constant 0 : i32
    %c0_i32_0 = arith.constant 0 : i32
    return %c0_i32, %arg1 : i32, i32
  }
  func.func @transform_4(%arg0: i32, %arg1: i32) -> i32 {
    %c0_i32 = arith.constant 0 : i32
    %c0_i32_0 = arith.constant 0 : i32
    return %c0_i32 : i32
  }
  func.func @transform_5(%arg0: i32, %arg1: i32) -> (i32, i32) {
    %c0_i32 = arith.constant 0 : i32
    %c0_i32_0 = arith.constant 0 : i32
    return %arg0, %c0_i32 : i32, i32
  }
}

</mosaic_0001>

<llo_original>
// kernel: tpu_custom_call.1
$region0: #{tpu_custom_call.1}
  #allocation0 [shape = 'u32[]', space=smem, size = 0x4, offset = 0x4, fixed_abs, tag = 'smem constant byte address 0x4 - core index']
  #allocation1 [shape = 'u32[144,128]{1,0:T(1,128)}', space=vmem, size = 0x12000, scoped, tag = 'internal scratch']
  #allocation2 [shape = 'f32[1]{0:T(128)S(6)}', space=smem, size = 0x200, scoped, tag = 'scoped memory for tpu_custom_call.1']
  %s0 = inlined_call_operand.hbm [shape: f32[16,32], index: 0, kind: input, shape index: {}]
  %s1 = inlined_call_operand.hbm [shape: bf16[32,32], index: 1, kind: input, shape index: {}]
  %s2 = inlined_call_operand.vmem [shape: f32[1,32], index: 2, kind: input, shape index: {}]
  %s3 = inlined_call_operand.vmem [shape: f32[1,32], index: 3, kind: input, shape index: {}]
  %s4 = inlined_call_operand.<no memory space> [shape: f32[1], index: 4, kind: input, shape index: {}]
  %s5 = inlined_call_operand.vmem [shape: f32[16,1], index: 5, kind: output, shape index: {}]
  %s6 = sld [smem:[#allocation0]]
  $region46: #{tpu_custom_call.1} parent=0
    _
  %s8 = ssub.s32 1, %s6
  %s9 = scalar_select 0, %s8, %s6
  %10 = sst [smem:[#allocation2]] %s4
  $region1: #{tpu_custom_call.1} parent=0
    #allocation3 [shape = 'u8[8192]{0}', space=vmem, size = 0x2000, scoped, tag = 'input window, operand 0, single buffered']
    #allocation4 [shape = 's32[1]{0}', space=sflag, size = 0x4, scoped, tag = 'scoped memory for tpu_custom_call.1']
    #allocation5 [shape = 'u8[8192]{0}', space=vmem, size = 0x2000, scoped, tag = 'input window, operand 1, single buffered']
    #allocation6 [shape = 's32[1]{0}', space=sflag, size = 0x4, scoped, tag = 'scoped memory for tpu_custom_call.1']
    %11 = vsyncpa [#allocation4], 0
    %12 = vsyncpa [#allocation6], 0
    // Predicated region
    $region2: #{tpu_custom_call.1} parent=1 // pred_check
      _
    $region3: #{tpu_custom_call.1} parent=1 // pred_check_branch
      %14 = sbr.rel (0) target = $region5
    $region4: #{tpu_custom_call.1} parent=1 // pred_region
      %s16 = ssub.s32 256, 256
      %17 = vsyncadd [#allocation4], %s16
      %s18 = sshll.u32 [#allocation3], 4
      %s19 = int_to_ptr.vmem [resolvable:$true] %s18
      %24 = dma.hbm_to_vmem [thread:$0]  %s0, 256, %s19, [#allocation4], 128, 128, 8
    $region5: #{tpu_custom_call.1} parent=1 // pred_fallthru
      _
    // Predicated region
    $region6: #{tpu_custom_call.1} parent=1 // pred_check
      _
    $region7: #{tpu_custom_call.1} parent=1 // pred_check_branch
      %26 = sbr.rel (0) target = $region9
    $region8: #{tpu_custom_call.1} parent=1 // pred_region
      %s28 = ssub.s32 256, 256
      %29 = vsyncadd [#allocation6], %s28
      %s30 = sshll.u32 [#allocation5], 4
      %s31 = int_to_ptr.vmem [resolvable:$true] %s30
      %36 = dma.hbm_to_vmem [thread:$0]  %s1, 256, %s31, [#allocation6], 64, 64, 4
    $region9: #{tpu_custom_call.1} parent=1 // pred_fallthru
      _
    // Predicated region
    $region10: #{tpu_custom_call.1} parent=1 // pred_check
      _
    $region11: #{tpu_custom_call.1} parent=1 // pred_check_branch
      %38 = sbr.rel (0) target = $region13
    $region12: #{tpu_custom_call.1} parent=1 // pred_region
      _
    $region13: #{tpu_custom_call.1} parent=1 // pred_fallthru
      _
    // Predicated region
    $region14: #{tpu_custom_call.1} parent=1 // pred_check
      _
    $region15: #{tpu_custom_call.1} parent=1 // pred_check_branch
      %40 = sbr.rel (0) target = $region17
    $region16: #{tpu_custom_call.1} parent=1 // pred_region
      _
    $region17: #{tpu_custom_call.1} parent=1 // pred_fallthru
      _
    // Predicated region
    $region18: #{tpu_custom_call.1} parent=1 // pred_check
      _
    $region19: #{tpu_custom_call.1} parent=1 // pred_check_branch
      %42 = sbr.rel (0) target = $region21
    $region20: #{tpu_custom_call.1} parent=1 // pred_region
      _
    $region21: #{tpu_custom_call.1} parent=1 // pred_fallthru
      _
    // Predicated region
    $region22: #{tpu_custom_call.1} parent=1 // pred_check
      _
    $region23: #{tpu_custom_call.1} parent=1 // pred_check_branch
      %44 = sbr.rel (0) target = $region25
    $region24: #{tpu_custom_call.1} parent=1 // pred_region
      %45 = dma.done [#allocation4], 256
    $region25: #{tpu_custom_call.1} parent=1 // pred_fallthru
      _
    // Predicated region
    $region26: #{tpu_custom_call.1} parent=1 // pred_check
      _
    $region27: #{tpu_custom_call.1} parent=1 // pred_check_branch
      %47 = sbr.rel (0) target = $region29
    $region28: #{tpu_custom_call.1} parent=1 // pred_region
      %48 = dma.done [#allocation6], 256
    $region29: #{tpu_custom_call.1} parent=1 // pred_fallthru
      _
    %p50 = scmp.eq.s32.totalorder 0, 0
    // Predicated region
    $region30: #{tpu_custom_call.1} parent=1 // pred_check
      %p51 = pneg %p50
    $region31: #{tpu_custom_call.1} parent=1 // pred_check_branch
      %53 = sbr.rel (%p51) target = $region33
    $region32: #{tpu_custom_call.1} parent=1 // pred_region
      %vm54 = vcmask 7168
      %55 = vst.msk [vmem:[%s5] sm:$0xff] %vm54, 0.0
      %56 = vst.msk [vmem:[%s5 + $0x8] sm:$0xff] %vm54, 0.0
    $region33: #{tpu_custom_call.1} parent=1 // pred_fallthru
      _
    %v57 = vld [vmem:[#allocation3] sm:$0xff]
    %v58 = vld [vmem:[#allocation3 + $0x8] sm:$0xff]
    %v59 = vpack.c.bf16 %v58, %v57
    %v60 = vld [vmem:[#allocation5] sm:$0xf]
    %v61 = vld [vmem:[#allocation5 + $0x4] sm:$0xf]
    %v62 = vld [vmem:[#allocation5 + $0x8] sm:$0xf]
    %v63 = vld [vmem:[#allocation5 + $0xc] sm:$0xf]
    %v64 = vld [vmem:[%s2] sm:$0x1]
    %v66 = vlaneseq
    %v67 = vshrl.u32 %v66, 7
    %v68 = vsub.s32 0, %v67
    %v69 = vrot.slane %v64, %v68
    %v75 = vunpack.c.l.b16 %v60
    %v76 = vunpack.c.l.b16 %v61
    %v77 = vunpack.c.l.b16 %v62
    %v78 = vunpack.c.l.b16 %v63
    %v79 = vpack.c.b16 %v76, %v75
    %v80 = vpack.c.b16 %v78, %v77
    %vm83 = vcmask 261120
    %v85 = vsel %vm83, %v59, 0
    %87 = vmatprep.subr.bf16.mxu0 0
    %88 = vmatpush1.bf16.msra.mxu0 %v79
    %89 = vmatprep.subr.bf16.mxu0 0
    %90 = vmatpush1.bf16.msra.mxu0 %v80
    %91 = vmatprep.subr.bf16.mxu0 0
    %92 = vmatpush1.bf16.msra.mxu0 0
    %93 = vmatprep.subr.bf16.mxu0 0
    %94 = vmatpush1.bf16.msra.mxu0 0
    %95 = vmatprep.subr.bf16.mxu0 0
    %96 = vmatpush1.bf16.msra.mxu0 0
    %97 = vmatprep.subr.bf16.mxu0 0
    %98 = vmatpush1.bf16.msra.mxu0 0
    %99 = vmatprep.subr.bf16.mxu0 0
    %100 = vmatpush1.bf16.msra.mxu0 0
    %101 = vmatprep.subr.bf16.mxu0 0
    %102 = vmatpush1.bf16.msra.mxu0 0
    %103 = vmatprep.subr.bf16.mxu0 0
    %104 = vmatpush1.bf16.msra.mxu0 0
    %105 = vmatprep.subr.bf16.mxu0 0
    %106 = vmatpush1.bf16.msra.mxu0 0
    %107 = vmatprep.subr.bf16.mxu0 0
    %108 = vmatpush1.bf16.msra.mxu0 0
    %109 = vmatprep.subr.bf16.mxu0 0
    %110 = vmatpush1.bf16.msra.mxu0 0
    %111 = vmatprep.subr.bf16.mxu0 0
    %112 = vmatpush1.bf16.msra.mxu0 0
    %113 = vmatprep.subr.bf16.mxu0 0
    %114 = vmatpush1.bf16.msra.mxu0 0
    %115 = vmatprep.subr.bf16.mxu0 0
    %116 = vmatpush1.bf16.msra.mxu0 0
    %117 = vmatprep.subr.bf16.mxu0 0
    %118 = vmatpush1.bf16.msra.mxu0 0
    %119 = vmatprep.mubr.bf16.mxu0 0
    %120 = vmatmul.mubr.bf16.gmra.mrb[0].mxu0 %v85
    %v121 = vpop.f32.mrb[0].mxu0
    %v122 = vadd.f32 %v69, %v121
    %v123 = vpop.f32.mrb[0].mxu0
    %v124 = vpop.f32.mrb[0].mxu0
    %v125 = vadd.f32 %v69, %v124
    %v126 = vpop.f32.mrb[0].mxu0
    %127 = vdwg.mxu0
    %v128 = vmax.f32 %v122, 0.0
    %v129 = vmax.f32 %v125, 0.0
    %v130 = vld [vmem:[%s5] sm:$0xff]
    %v131 = vld [vmem:[%s5 + $0x8] sm:$0xff]
    %v132 = vld [vmem:[%s3] sm:$0x1]
    %v134 = vlaneseq
    %v135 = vshrl.u32 %v134, 7
    %v136 = vsub.s32 0, %v135
    %v137 = vrot.slane %v132, %v136
    %v139 = vmul.f32 %v128, %v137
    %v140 = vmul.f32 %v129, %v137
    %v141 = vsel %vm83, %v139, 0.0
    %142 = vadd.xlane.f32.xlu0 %v141
    %v143 = vpop.xlane.xlu0 %142
    %v144 = vsel %vm83, %v140, 0.0
    %145 = vadd.xlane.f32.xlu0 %v144
    %v146 = vpop.xlane.xlu0 %145
    %v147 = vadd.f32 %v130, %v143
    %v148 = vadd.f32 %v131, %v146
    %vm149 = vcmask 7168
    %150 = vst.msk [vmem:[%s5] sm:$0xff] %vm149, %v147
    %151 = vst.msk [vmem:[%s5 + $0x8] sm:$0xff] %vm149, %v148
    // Predicated region
    $region34: #{tpu_custom_call.1} parent=1 // pred_check
      %p152 = pneg %p50
    $region35: #{tpu_custom_call.1} parent=1 // pred_check_branch
      %154 = sbr.rel (%p152) target = $region37
    $region36: #{tpu_custom_call.1} parent=1 // pred_region
      %v155 = vld [vmem:[%s5] sm:$0xff]
      %v156 = vld [vmem:[%s5 + $0x8] sm:$0xff]
      %s157 = sld [smem:[#allocation2]]
      %v158 = vstv %s157
      %v159 = vadd.f32 %v155, %v158
      %v160 = vadd.f32 %v156, %v158
      %161 = vst.msk [vmem:[%s5] sm:$0xff] %vm149, %v159
      %162 = vst.msk [vmem:[%s5 + $0x8] sm:$0xff] %vm149, %v160
    $region37: #{tpu_custom_call.1} parent=1 // pred_fallthru
      _
    // Predicated region
    $region38: #{tpu_custom_call.1} parent=1 // pred_check
      _
    $region39: #{tpu_custom_call.1} parent=1 // pred_check_branch
      %164 = sbr.rel (0) target = $region41
    $region40: #{tpu_custom_call.1} parent=1 // pred_region
      _
    $region41: #{tpu_custom_call.1} parent=1 // pred_fallthru
      _
    // Predicated region
    $region42: #{tpu_custom_call.1} parent=1 // pred_check
      _
    $region43: #{tpu_custom_call.1} parent=1 // pred_check_branch
      %166 = sbr.rel (0) target = $region45
    $region44: #{tpu_custom_call.1} parent=1 // pred_region
      _
    $region45: #{tpu_custom_call.1} parent=1 // pred_fallthru
      _
    %167 = vsyncpa [#allocation4], 1
    %168 = vsyncpa [#allocation6], 1

// kernel: tpu_custom_call.1
$region0: #{tpu_custom_call.1}
  #allocation0 [shape = 'u32[]', space=smem, size = 0x4, offset = 0x4, fixed_abs, tag = 'smem constant byte address 0x4 - core index']
  #allocation1 [shape = 'u32[144,128]{1,0:T(1,128)}', space=vmem, size = 0x12000, scoped, tag = 'internal scratch']
  #allocation2 [shape = 'f32[1]{0:T(128)S(6)}', space=smem, size = 0x200, scoped, tag = 'scoped memory for tpu_custom_call.1']
  %s0 = inlined_call_operand.hbm [shape: f32[16,32], index: 0, kind: input, shape index: {}]
  %s1 = inlined_call_operand.hbm [shape: bf16[32,32], index: 1, kind: input, shape index: {}]
  %s2 = inlined_call_operand.vmem [shape: f32[1,32], index: 2, kind: input, shape index: {}]
  %s3 = inlined_call_operand.vmem [shape: f32[1,32], index: 3, kind: input, shape index: {}]
  %s4 = inlined_call_operand.<no memory space> [shape: f32[1], index: 4, kind: input, shape index: {}]
  %s5 = inlined_call_operand.vmem [shape: f32[16,1], index: 5, kind: output, shape index: {}]
  %s6 = sld [smem:[#allocation0]]
  $region46: #{tpu_custom_call.1} parent=0
    _
  %s8 = ssub.s32 1, %s6
  %s9 = scalar_select 0, %s8, %s6
  %10 = sst [smem:[#allocation2]] %s4
  $region1: #{tpu_custom_call.1} parent=0
    #allocation3 [shape = 'u8[8192]{0}', space=vmem, size = 0x2000, scoped, tag = 'input window, operand 0, single buffered']
    #allocation4 [shape = 's32[1]{0}', space=sflag, size = 0x4, scoped, tag = 'scoped memory for tpu_custom_call.1']
    #allocation5 [shape = 'u8[8192]{0}', space=vmem, size = 0x2000, scoped, tag = 'input window, operand 1, single buffered']
    #allocation6 [shape = 's32[1]{0}', space=sflag, size = 0x4, scoped, tag = 'scoped memory for tpu_custom_call.1']
    %11 = vsyncpa [#allocation4], 0
    %12 = vsyncpa [#allocation6], 0
    // Predicated region
    $region2: #{tpu_custom_call.1} parent=1 // pred_check
      _
    $region3: #{tpu_custom_call.1} parent=1 // pred_check_branch
      %14 = sbr.rel (0) target = $region5
    $region4: #{tpu_custom_call.1} parent=1 // pred_region
      %s16 = ssub.s32 256, 256
      %17 = vsyncadd [#allocation4], %s16
      %s18 = sshll.u32 [#allocation3], 4
      %s19 = int_to_ptr.vmem [resolvable:$true] %s18
      %24 = dma.hbm_to_vmem [thread:$0]  %s0, 256, %s19, [#allocation4], 128, 128, 8
    $region5: #{tpu_custom_call.1} parent=1 // pred_fallthru
      _
    // Predicated region
    $region6: #{tpu_custom_call.1} parent=1 // pred_check
      _
    $region7: #{tpu_custom_call.1} parent=1 // pred_check_branch
      %26 = sbr.rel (0) target = $region9
    $region8: #{tpu_custom_call.1} parent=1 // pred_region
      %s28 = ssub.s32 256, 256
      %29 = vsyncadd [#allocation6], %s28
      %s30 = sshll.u32 [#allocation5], 4
      %s31 = int_to_ptr.vmem [resolvable:$true] %s30
      %36 = dma.hbm_to_vmem [thread:$0]  %s1, 256, %s31, [#allocation6], 64, 64, 4
    $region9: #{tpu_custom_call.1} parent=1 // pred_fallthru
      _
    // Predicated region
    $region10: #{tpu_custom_call.1} parent=1 // pred_check
      _
    $region11: #{tpu_custom_call.1} parent=1 // pred_check_branch
      %38 = sbr.rel (0) target = $region13
    $region12: #{tpu_custom_call.1} parent=1 // pred_region
      _
    $region13: #{tpu_custom_call.1} parent=1 // pred_fallthru
      _
    // Predicated region
    $region14: #{tpu_custom_call.1} parent=1 // pred_check
      _
    $region15: #{tpu_custom_call.1} parent=1 // pred_check_branch
      %40 = sbr.rel (0) target = $region17
    $region16: #{tpu_custom_call.1} parent=1 // pred_region
      _
    $region17: #{tpu_custom_call.1} parent=1 // pred_fallthru
      _
    // Predicated region
    $region18: #{tpu_custom_call.1} parent=1 // pred_check
      _
    $region19: #{tpu_custom_call.1} parent=1 // pred_check_branch
      %42 = sbr.rel (0) target = $region21
    $region20: #{tpu_custom_call.1} parent=1 // pred_region
      _
    $region21: #{tpu_custom_call.1} parent=1 // pred_fallthru
      _
    // Predicated region
    $region22: #{tpu_custom_call.1} parent=1 // pred_check
      _
    $region23: #{tpu_custom_call.1} parent=1 // pred_check_branch
      %44 = sbr.rel (0) target = $region25
    $region24: #{tpu_custom_call.1} parent=1 // pred_region
      %45 = dma.done [#allocation4], 256
    $region25: #{tpu_custom_call.1} parent=1 // pred_fallthru
      _
    // Predicated region
    $region26: #{tpu_custom_call.1} parent=1 // pred_check
      _
    $region27: #{tpu_custom_call.1} parent=1 // pred_check_branch
      %47 = sbr.rel (0) target = $region29
    $region28: #{tpu_custom_call.1} parent=1 // pred_region
      %48 = dma.done [#allocation6], 256
    $region29: #{tpu_custom_call.1} parent=1 // pred_fallthru
      _
    %p50 = scmp.eq.s32.totalorder 0, 0
    // Predicated region
    $region30: #{tpu_custom_call.1} parent=1 // pred_check
      %p51 = pneg %p50
    $region31: #{tpu_custom_call.1} parent=1 // pred_check_branch
      %53 = sbr.rel (%p51) target = $region33
    $region32: #{tpu_custom_call.1} parent=1 // pred_region
      %vm54 = vcmask 7168
      %55 = vst.msk [vmem:[%s5] sm:$0xff] %vm54, 0.0
      %56 = vst.msk [vmem:[%s5 + $0x8] sm:$0xff] %vm54, 0.0
    $region33: #{tpu_custom_call.1} parent=1 // pred_fallthru
      _
    %v57 = vld [vmem:[#allocation3] sm:$0xff]
    %v58 = vld [vmem:[#allocation3 + $0x8] sm:$0xff]
    %v59 = vpack.c.bf16 %v58, %v57
    %v60 = vld [vmem:[#allocation5] sm:$0xf]
    %v61 = vld [vmem:[#allocation5 + $0x4] sm:$0xf]
    %v62 = vld [vmem:[#allocation5 + $0x8] sm:$0xf]
    %v63 = vld [vmem:[#allocation5 + $0xc] sm:$0xf]
    %v64 = vld [vmem:[%s2] sm:$0x1]
    %v66 = vlaneseq
    %v67 = vshrl.u32 %v66, 7
    %v68 = vsub.s32 0, %v67
    %v69 = vrot.slane %v64, %v68
    %v75 = vunpack.c.l.b16 %v60
    %v76 = vunpack.c.l.b16 %v61
    %v77 = vunpack.c.l.b16 %v62
    %v78 = vunpack.c.l.b16 %v63
    %v79 = vpack.c.b16 %v76, %v75
    %v80 = vpack.c.b16 %v78, %v77
    %vm83 = vcmask 261120
    %v85 = vsel %vm83, %v59, 0
    %87 = vmatprep.subr.bf16.mxu0 0
    %88 = vmatpush1.bf16.msra.mxu0 %v79
    %89 = vmatprep.subr.bf16.mxu0 0
    %90 = vmatpush1.bf16.msra.mxu0 %v80
    %91 = vmatprep.subr.bf16.mxu0 0
    %92 = vmatpush1.bf16.msra.mxu0 0
    %93 = vmatprep.subr.bf16.mxu0 0
    %94 = vmatpush1.bf16.msra.mxu0 0
    %95 = vmatprep.subr.bf16.mxu0 0
    %96 = vmatpush1.bf16.msra.mxu0 0
    %97 = vmatprep.subr.bf16.mxu0 0
    %98 = vmatpush1.bf16.msra.mxu0 0
    %99 = vmatprep.subr.bf16.mxu0 0
    %100 = vmatpush1.bf16.msra.mxu0 0
    %101 = vmatprep.subr.bf16.mxu0 0
    %102 = vmatpush1.bf16.msra.mxu0 0
    %103 = vmatprep.subr.bf16.mxu0 0
    %104 = vmatpush1.bf16.msra.mxu0 0
    %105 = vmatprep.subr.bf16.mxu0 0
    %106 = vmatpush1.bf16.msra.mxu0 0
    %107 = vmatprep.subr.bf16.mxu0 0
    %108 = vmatpush1.bf16.msra.mxu0 0
    %109 = vmatprep.subr.bf16.mxu0 0
    %110 = vmatpush1.bf16.msra.mxu0 0
    %111 = vmatprep.subr.bf16.mxu0 0
    %112 = vmatpush1.bf16.msra.mxu0 0
    %113 = vmatprep.subr.bf16.mxu0 0
    %114 = vmatpush1.bf16.msra.mxu0 0
    %115 = vmatprep.subr.bf16.mxu0 0
    %116 = vmatpush1.bf16.msra.mxu0 0
    %117 = vmatprep.subr.bf16.mxu0 0
    %118 = vmatpush1.bf16.msra.mxu0 0
    %119 = vmatprep.mubr.bf16.mxu0 0
    %120 = vmatmul.mubr.bf16.gmra.mrb[0].mxu0 %v85
    %v121 = vpop.f32.mrb[0].mxu0
    %v122 = vadd.f32 %v69, %v121
    %v123 = vpop.f32.mrb[0].mxu0
    %v124 = vpop.f32.mrb[0].mxu0
    %v125 = vadd.f32 %v69, %v124
    %v126 = vpop.f32.mrb[0].mxu0
    %127 = vdwg.mxu0
    %v128 = vmax.f32 %v122, 0.0
    %v129 = vmax.f32 %v125, 0.0
    %v130 = vld [vmem:[%s5] sm:$0xff]
    %v131 = vld [vmem:[%s5 + $0x8] sm:$0xff]
    %v132 = vld [vmem:[%s3] sm:$0x1]
    %v134 = vlaneseq
    %v135 = vshrl.u32 %v134, 7
    %v136 = vsub.s32 0, %v135
    %v137 = vrot.slane %v132, %v136
    %v139 = vmul.f32 %v128, %v137
    %v140 = vmul.f32 %v129, %v137
    %v141 = vsel %vm83, %v139, 0.0
    %142 = vadd.xlane.f32.xlu0 %v141
    %v143 = vpop.xlane.xlu0 %142
    %v144 = vsel %vm83, %v140, 0.0
    %145 = vadd.xlane.f32.xlu0 %v144
    %v146 = vpop.xlane.xlu0 %145
    %v147 = vadd.f32 %v130, %v143
    %v148 = vadd.f32 %v131, %v146
    %vm149 = vcmask 7168
    %150 = vst.msk [vmem:[%s5] sm:$0xff] %vm149, %v147
    %151 = vst.msk [vmem:[%s5 + $0x8] sm:$0xff] %vm149, %v148
    // Predicated region
    $region34: #{tpu_custom_call.1} parent=1 // pred_check
      %p152 = pneg %p50
    $region35: #{tpu_custom_call.1} parent=1 // pred_check_branch
      %154 = sbr.rel (%p152) target = $region37
    $region36: #{tpu_custom_call.1} parent=1 // pred_region
      %v155 = vld [vmem:[%s5] sm:$0xff]
      %v156 = vld [vmem:[%s5 + $0x8] sm:$0xff]
      %s157 = sld [smem:[#allocation2]]
      %v158 = vstv %s157
      %v159 = vadd.f32 %v155, %v158
      %v160 = vadd.f32 %v156, %v158
      %161 = vst.msk [vmem:[%s5] sm:$0xff] %vm149, %v159
      %162 = vst.msk [vmem:[%s5 + $0x8] sm:$0xff] %vm149, %v160
    $region37: #{tpu_custom_call.1} parent=1 // pred_fallthru
      _
    // Predicated region
    $region38: #{tpu_custom_call.1} parent=1 // pred_check
      _
    $region39: #{tpu_custom_call.1} parent=1 // pred_check_branch
      %164 = sbr.rel (0) target = $region41
    $region40: #{tpu_custom_call.1} parent=1 // pred_region
      _
    $region41: #{tpu_custom_call.1} parent=1 // pred_fallthru
      _
    // Predicated region
    $region42: #{tpu_custom_call.1} parent=1 // pred_check
      _
    $region43: #{tpu_custom_call.1} parent=1 // pred_check_branch
      %166 = sbr.rel (0) target = $region45
    $region44: #{tpu_custom_call.1} parent=1 // pred_region
      _
    $region45: #{tpu_custom_call.1} parent=1 // pred_fallthru
      _
    %167 = vsyncpa [#allocation4], 1
    %168 = vsyncpa [#allocation6], 1

</llo_original>
